<compile_context>
chip_gen: v7x
topology: tpu7x:2x2x1
jax: 0.10.0
libtpu: 0.0.40
codegen_flags: <defaults>
</compile_context>

<pallas_src>
import functools

import jax
import jax.numpy as jnp
from jax.experimental import pallas as pl
from jax.experimental.pallas import tpu as pltpu


def _mlp_predictor_kernel(xs_ref, xd_ref, w1a_ref, w1b_ref, b1_ref, w2_ref,
                          b2_ref, *rest, has_seed):
    """score(1,TE) = sum_h W2[h] * ReLU(W1a@xs + W1b@xd + b1)[h,:] + b2 (+seed)."""
    if has_seed:
        seed_ref, o_ref = rest
    else:
        (o_ref,) = rest

    # hidden = ReLU(W1a @ xs + W1b @ xd + b1)   -> (H_pad, TE), lane-dense.
    # bf16 MXU inputs, f32 accumulation.
    hidden = jnp.dot(w1a_ref[...], xs_ref[...],
                     preferred_element_type=jnp.float32)
    hidden = hidden + jnp.dot(w1b_ref[...], xd_ref[...],
                              preferred_element_type=jnp.float32)
    hidden = jnp.maximum(hidden + b1_ref[...], 0.0)

    # Second layer (H -> 1) on the VPU/XLU: broadcast-multiply + sublane
    # reduce instead of an M=1 MXU matmul (1/256 MXU row utilization and a
    # serial MRF dependency on v5e/v6e for negligible FLOPs).
    score = jnp.sum(w2_ref[...] * hidden, axis=0, keepdims=True)  # (1, TE)
    score = score + b2_ref[0, 0]
    if has_seed:
        score = score + seed_ref[...]
    o_ref[...] = score


def _round_up(x, m):
    return ((x + m - 1) // m) * m


def _tpu_vmem_and_cores():
    """Best-effort per-TensorCore VMEM capacity and TC-per-chip count."""
    vmem_capacity = 64 * 1024 * 1024   # conservative default (v7x per-TC VMEM)
    num_cores = 1
    try:
        vmem_capacity = int(pltpu.get_tpu_info().vmem_capacity_bytes)
    except Exception:
        pass
    try:
        d = jax.devices()[0]
        num_cores = int(getattr(d, "num_cores", 1) or 1)
        kind = str(getattr(d, "device_kind", "")).lower()
        if "7" in kind:                # v7x: 2 TensorCores per chip
            num_cores = max(num_cores, 2)
    except Exception:
        pass
    return vmem_capacity, num_cores


def _choose_tile_e(num_edges, f_pad, vmem_capacity, num_cores, max_tile=8192):
    """VMEM- and generation-aware lane-tile size for the edge dimension."""
    e128 = _round_up(max(num_edges, 1), 128)

    # Budget ~half of VMEM for the buffers that scale with tile_e, leaving
    # headroom for the resident weight blocks and compiler scratch.
    budget = vmem_capacity // 2
    # Per-lane bytes: xs + xd bf16 double buffers + (1,TE) f32 out/seed buffers.
    bytes_per_lane = 2 * (2 * f_pad * 2) + 2 * 2 * 4
    tile = budget // max(bytes_per_lane, 1)
    tile = max(128, min(max_tile, (tile // 128) * 128, e128))

    if num_cores >= 2 and e128 >= 4 * 1024:
        # v7x: the ("parallel",) grid axis is sharded across 2 TCs; target
        # >= 4 steps (>= 2 per core) so each core's i+1 DMA overlaps compute,
        # while keeping lane tiles >= 1024 to stay on the HBM roofline.
        while e128 // tile < 4 and tile >= 2 * 1024:
            tile = ((tile // 2) // 128) * 128
    return tile


def _vmem_limit_bytes(f_pad, h_pad, tile_e, vmem_capacity, has_seed):
    act = 2 * (2 * f_pad * tile_e * 2)                 # xs + xd bf16, 2 buffers
    outs = 2 * (1 * tile_e * 4) * (2 if has_seed else 1)
    wts = 2 * (2 * h_pad * f_pad * 2 + 2 * h_pad * 4)  # W1a/W1b + b1/W2 columns
    hidden = h_pad * tile_e * 4                        # in-kernel f32 hidden
    need = act + outs + wts + hidden
    return int(min(vmem_capacity, max(2 * need, 32 * 1024 * 1024)))


def mlp_predictor_forward(h_src_nodes, h_dst_nodes, src_idx, dst_idx, params,
                          seed_score=None, use_seed_score=False,
                          max_tile_e=8192):
    """Link-prediction scores for edges (src_idx[i], dst_idx[i]).

    Args:
      h_src_nodes: (N_src, F) source-type node embeddings.
      h_dst_nodes: (N_dst, F) destination-type node embeddings.
      src_idx, dst_idx: (E,) int32 edge endpoints.
      params: dict with W1 (H, 2F), b1 (H,), W2 (1, H), b2 (1,) [PyTorch layout]
      seed_score: optional (E,) float32, added when use_seed_score=True.
    Returns:
      (E,) float32 scores.
    """
    F = h_src_nodes.shape[1]
    H, two_f = params["W1"].shape
    assert two_f == 2 * F, "W1 must have shape (hidden_feats, 2*in_feats)"
    E = src_idx.shape[0]

    f_pad = _round_up(F, 16)   # bf16 sublane packing
    h_pad = _round_up(H, 16)

    vmem_capacity, num_cores = _tpu_vmem_and_cores()
    tile_e = _choose_tile_e(E, f_pad, vmem_capacity, num_cores,
                            max_tile=max_tile_e)
    e_pad = _round_up(E, tile_e)

    # --- pad the cheap side: indices / seed, and the tiny node tables -------
    src_idx_p = jnp.pad(src_idx.astype(jnp.int32), (0, e_pad - E))
    dst_idx_p = jnp.pad(dst_idx.astype(jnp.int32), (0, e_pad - E))
    h_src_bf = jnp.pad(h_src_nodes.astype(jnp.bfloat16),
                       ((0, 0), (0, f_pad - F)))
    h_dst_bf = jnp.pad(h_dst_nodes.astype(jnp.bfloat16),
                       ((0, 0), (0, f_pad - F)))

    # --- glue: endpoint gather (major-dim take) + one transpose to the
    #     feature-on-sublane / edge-on-lane layout the kernel consumes -------
    # TODO(synk): for large F (row >= ~512 B) fuse this gather into the kernel
    # (scalar-prefetched indices + manual per-row DMAs, double-buffered) to
    # drop this pass entirely; at tiny F the XLA gather is the right call.
    xs = jnp.take(h_src_bf, src_idx_p, axis=0).T      # (f_pad, e_pad) bf16
    xd = jnp.take(h_dst_bf, dst_idx_p, axis=0).T      # (f_pad, e_pad) bf16

    # --- tiny resident weight blocks (bf16 matmul inputs, f32 bias/column) --
    w1 = params["W1"].astype(jnp.float32)
    w1a = jnp.pad(w1[:, :F],
                  ((0, h_pad - H), (0, f_pad - F))).astype(jnp.bfloat16)
    w1b = jnp.pad(w1[:, F:],
                  ((0, h_pad - H), (0, f_pad - F))).astype(jnp.bfloat16)
    b1 = jnp.pad(params["b1"].astype(jnp.float32),
                 (0, h_pad - H)).reshape(h_pad, 1)
    w2 = jnp.pad(params["W2"].astype(jnp.float32).reshape(-1),
                 (0, h_pad - H)).reshape(h_pad, 1)
    b2 = params["b2"].astype(jnp.float32).reshape(1, 1)         # SMEM scalar

    has_seed = bool(use_seed_score) and seed_score is not None

    grid = (e_pad // tile_e,)
    in_specs = [
        pl.BlockSpec((f_pad, tile_e), lambda i: (0, i)),    # xs tile
        pl.BlockSpec((f_pad, tile_e), lambda i: (0, i)),    # xd tile
        pl.BlockSpec((h_pad, f_pad), lambda i: (0, 0)),     # W1a (resident)
        pl.BlockSpec((h_pad, f_pad), lambda i: (0, 0)),     # W1b (resident)
        pl.BlockSpec((h_pad, 1), lambda i: (0, 0)),         # b1 column
        pl.BlockSpec((h_pad, 1), lambda i: (0, 0)),         # W2 column
        pl.BlockSpec(memory_space=pltpu.MemorySpace.SMEM),  # b2 scalar
    ]
    operands = [xs, xd, w1a, w1b, b1, w2, b2]
    if has_seed:
        seed2d = jnp.pad(seed_score.astype(jnp.float32),
                         (0, e_pad - E)).reshape(1, e_pad)
        in_specs.append(pl.BlockSpec((1, tile_e), lambda i: (0, i)))
        operands.append(seed2d)

    vmem_limit = _vmem_limit_bytes(f_pad, h_pad, tile_e, vmem_capacity,
                                   has_seed)

    out = pl.pallas_call(
        functools.partial(_mlp_predictor_kernel, has_seed=has_seed),
        out_shape=jax.ShapeDtypeStruct((1, e_pad), jnp.float32),
        grid_spec=pltpu.PrefetchScalarGridSpec(
            num_scalar_prefetch=0,
            grid=grid,
            in_specs=in_specs,
            out_specs=pl.BlockSpec((1, tile_e), lambda i: (0, i)),
        ),
        compiler_params=pltpu.CompilerParams(
            dimension_semantics=("parallel",),
            vmem_limit_bytes=vmem_limit),
    )(*operands)

    return out.reshape(e_pad)[:E]


def init_params(key, in_feats, hidden_feats):
    """Deterministic init matching nn.Linear default (uniform +/- 1/sqrt(fan_in))."""
    k1, k2, k3, k4 = jax.random.split(key, 4)
    bnd1 = 1.0 / jnp.sqrt(2 * in_feats)
    bnd2 = 1.0 / jnp.sqrt(hidden_feats)
    return {
        "W1": jax.random.uniform(k1, (hidden_feats, 2 * in_feats),
                                 jnp.float32, -bnd1, bnd1),
        "b1": jax.random.uniform(k2, (hidden_feats,), jnp.float32, -bnd1, bnd1),
        "W2": jax.random.uniform(k3, (1, hidden_feats), jnp.float32, -bnd2, bnd2),
        "b2": jax.random.uniform(k4, (1,), jnp.float32, -bnd2, bnd2),
    }


if __name__ == "__main__":
    key = jax.random.PRNGKey(0)
    k_hs, k_hd, k_src, k_dst, k_seed, k_par = jax.random.split(key, 6)

    in_feats = 16       # F
    hidden_feats = 32   # H
    n_src_nodes = 24
    n_dst_nodes = 20
    n_edges = 200       # deliberately not a multiple of the lane tile

    h_src_nodes = jax.random.normal(k_hs, (n_src_nodes, in_feats), jnp.float32)
    h_dst_nodes = jax.random.normal(k_hd, (n_dst_nodes, in_feats), jnp.float32)
    src_idx = jax.random.randint(k_src, (n_edges,), 0, n_src_nodes, jnp.int32)
    dst_idx = jax.random.randint(k_dst, (n_edges,), 0, n_dst_nodes, jnp.int32)
    seed_score = jax.random.normal(k_seed, (n_edges,), jnp.float32)

    params = init_params(k_par, in_feats, hidden_feats)

    # Pure-JAX f32 reference (module semantics).
    h_src = jnp.take(h_src_nodes, src_idx, axis=0)
    h_dst = jnp.take(h_dst_nodes, dst_idx, axis=0)
    h_cat = jnp.concatenate([h_src, h_dst], axis=1)
    hid = jnp.maximum(h_cat @ params["W1"].T + params["b1"], 0.0)
    ref = (hid @ params["W2"].T + params["b2"]).squeeze()

    # bf16 activation/weight streams (f32 accumulation) -> loosened tolerance.
    TOL = 5e-2

    # Path 1: with seed_score (use_seed_score=True).
    score_seed = mlp_predictor_forward(h_src_nodes, h_dst_nodes, src_idx,
                                       dst_idx, params,
                                       seed_score=seed_score,
                                       use_seed_score=True)
    score_seed = jax.block_until_ready(score_seed)
    assert score_seed.shape == (n_edges,)
    assert jnp.allclose(score_seed, ref + seed_score, atol=TOL, rtol=TOL), \
        "mismatch vs reference (seed path)"

    # Path 2: without seed_score (no seed stream through the pipeline).
    score_plain = mlp_predictor_forward(h_src_nodes, h_dst_nodes, src_idx,
                                        dst_idx, params,
                                        use_seed_score=False)
    score_plain = jax.block_until_ready(score_plain)
    assert score_plain.shape == (n_edges,)
    assert jnp.allclose(score_plain, ref, atol=TOL, rtol=TOL), \
        "mismatch vs reference (no-seed path)"

    print("KERNEL_OK")
</pallas_src>

<mosaic_0001>
module attributes {stable_mosaic.version = 11 : i64} {
  func.func @_mlp_predictor_kernel(%arg0: i32, %arg1: memref<16x256xbf16, #tpu.memory_space<vmem>>, %arg2: memref<16x256xbf16, #tpu.memory_space<vmem>>, %arg3: memref<32x16xbf16, #tpu.memory_space<vmem>>, %arg4: memref<32x16xbf16, #tpu.memory_space<vmem>>, %arg5: memref<32x1xf32, #tpu.memory_space<vmem>>, %arg6: memref<32x1xf32, #tpu.memory_space<vmem>>, %arg7: memref<1x1xf32, #tpu.memory_space<smem>>, %arg8: memref<1x256xf32, #tpu.memory_space<vmem>>, %arg9: memref<1x256xf32, #tpu.memory_space<vmem>>) attributes {dimension_semantics = [#tpu.dimension_semantics<parallel>], iteration_bounds = array<i64: 1>, scalar_prefetch = 0 : i64, scratch_operands = 0 : i64, tpu.core_type = #tpu.core_type<tc>, window_params = [{transform_indices = @transform_0, window_bounds = array<i64: 16, 256>}, {transform_indices = @transform_1, window_bounds = array<i64: 16, 256>}, {pipeline_mode = #tpu.pipeline_mode<synchronous>, transform_indices = @transform_2, window_bounds = array<i64: 32, 16>}, {pipeline_mode = #tpu.pipeline_mode<synchronous>, transform_indices = @transform_3, window_bounds = array<i64: 32, 16>}, {pipeline_mode = #tpu.pipeline_mode<synchronous>, transform_indices = @transform_4, window_bounds = array<i64: 32, 1>}, {pipeline_mode = #tpu.pipeline_mode<synchronous>, transform_indices = @transform_5, window_bounds = array<i64: 32, 1>}, {transform_indices = @transform_6, window_bounds = array<i64: 1, 1>}, {transform_indices = @transform_7, window_bounds = array<i64: 1, 256>}, {transform_indices = @transform_8, window_bounds = array<i64: 1, 256>}]} {
    %c0 = arith.constant 0 : index
    %c0_0 = arith.constant 0 : index
    %0 = vector.load %arg3[%c0, %c0_0] : memref<32x16xbf16, #tpu.memory_space<vmem>>, vector<32x16xbf16>
    %c0_1 = arith.constant 0 : index
    %c0_2 = arith.constant 0 : index
    %1 = vector.load %arg1[%c0_1, %c0_2] : memref<16x256xbf16, #tpu.memory_space<vmem>>, vector<16x256xbf16>
    %cst = arith.constant dense<0.000000e+00> : vector<32x256xf32>
    %2 = tpu.matmul %0, %1, %cst {dimension_numbers = #tpu.dot_dimension_numbers<[1], [0], [0], [1], [0, 0, 1, 1], [], []>} : vector<32x16xbf16>, vector<16x256xbf16>, vector<32x256xf32> -> vector<32x256xf32>
    %c0_3 = arith.constant 0 : index
    %c0_4 = arith.constant 0 : index
    %3 = vector.load %arg4[%c0_3, %c0_4] : memref<32x16xbf16, #tpu.memory_space<vmem>>, vector<32x16xbf16>
    %c0_5 = arith.constant 0 : index
    %c0_6 = arith.constant 0 : index
    %4 = vector.load %arg2[%c0_5, %c0_6] : memref<16x256xbf16, #tpu.memory_space<vmem>>, vector<16x256xbf16>
    %cst_7 = arith.constant dense<0.000000e+00> : vector<32x256xf32>
    %5 = tpu.matmul %3, %4, %cst_7 {dimension_numbers = #tpu.dot_dimension_numbers<[1], [0], [0], [1], [0, 0, 1, 1], [], []>} : vector<32x16xbf16>, vector<16x256xbf16>, vector<32x256xf32> -> vector<32x256xf32>
    %6 = arith.addf %2, %5 : vector<32x256xf32>
    %c0_8 = arith.constant 0 : index
    %c0_9 = arith.constant 0 : index
    %7 = vector.load %arg5[%c0_8, %c0_9] : memref<32x1xf32, #tpu.memory_space<vmem>>, vector<32x1xf32>
    %8 = vector.broadcast %7 : vector<32x1xf32> to vector<32x256xf32>
    %9 = arith.addf %6, %8 : vector<32x256xf32>
    %cst_10 = arith.constant 0.000000e+00 : f32
    %10 = vector.broadcast %cst_10 : f32 to vector<32x256xf32>
    %11 = arith.maximumf %9, %10 : vector<32x256xf32>
    %c0_11 = arith.constant 0 : index
    %c0_12 = arith.constant 0 : index
    %12 = vector.load %arg6[%c0_11, %c0_12] : memref<32x1xf32, #tpu.memory_space<vmem>>, vector<32x1xf32>
    %13 = vector.broadcast %12 : vector<32x1xf32> to vector<32x256xf32>
    %14 = arith.mulf %13, %11 : vector<32x256xf32>
    %cst_13 = arith.constant dense<0.000000e+00> : vector<256xf32>
    %15 = vector.multi_reduction <add>, %14, %cst_13 [0] : vector<32x256xf32> to vector<256xf32>
    %16 = vector.shape_cast %15 : vector<256xf32> to vector<1x256xf32>
    %c0_14 = arith.constant 0 : index
    %c0_15 = arith.constant 0 : index
    %17 = memref.load %arg7[%c0_14, %c0_15] : memref<1x1xf32, #tpu.memory_space<smem>>
    %18 = vector.broadcast %17 : f32 to vector<1x256xf32>
    %19 = arith.addf %16, %18 : vector<1x256xf32>
    %c0_16 = arith.constant 0 : index
    %c0_17 = arith.constant 0 : index
    %20 = vector.load %arg8[%c0_16, %c0_17] : memref<1x256xf32, #tpu.memory_space<vmem>>, vector<1x256xf32>
    %21 = arith.addf %19, %20 : vector<1x256xf32>
    %c0_18 = arith.constant 0 : index
    %c0_19 = arith.constant 0 : index
    %22 = vector.load %arg9[%c0_18, %c0_19] : memref<1x256xf32, #tpu.memory_space<vmem>>, vector<1x256xf32>
    tpu.vector_store %arg9[%c0_18, %c0_19], %21 {strides = array<i32>} : memref<1x256xf32, #tpu.memory_space<vmem>>, vector<1x256xf32>,
    return
  }
  func.func @transform_0(%arg0: i32) -> (i32, i32) {
    %c0_i32 = arith.constant 0 : i32
    %c0_i32_0 = arith.constant 0 : i32
    return %c0_i32, %arg0 : i32, i32
  }
  func.func @transform_1(%arg0: i32) -> (i32, i32) {
    %c0_i32 = arith.constant 0 : i32
    %c0_i32_0 = arith.constant 0 : i32
    return %c0_i32, %arg0 : i32, i32
  }
  func.func @transform_2(%arg0: i32) -> (i32, i32) {
    %c0_i32 = arith.constant 0 : i32
    %c0_i32_0 = arith.constant 0 : i32
    %c0_i32_1 = arith.constant 0 : i32
    return %c0_i32, %c0_i32_0 : i32, i32
  }
  func.func @transform_3(%arg0: i32) -> (i32, i32) {
    %c0_i32 = arith.constant 0 : i32
    %c0_i32_0 = arith.constant 0 : i32
    %c0_i32_1 = arith.constant 0 : i32
    return %c0_i32, %c0_i32_0 : i32, i32
  }
  func.func @transform_4(%arg0: i32) -> (i32, i32) {
    %c0_i32 = arith.constant 0 : i32
    %c0_i32_0 = arith.constant 0 : i32
    %c0_i32_1 = arith.constant 0 : i32
    return %c0_i32, %c0_i32_0 : i32, i32
  }
  func.func @transform_5(%arg0: i32) -> (i32, i32) {
    %c0_i32 = arith.constant 0 : i32
    %c0_i32_0 = arith.constant 0 : i32
    %c0_i32_1 = arith.constant 0 : i32
    return %c0_i32, %c0_i32_0 : i32, i32
  }
  func.func @transform_6(%arg0: i32) -> (i32, i32) {
    %c0_i32 = arith.constant 0 : i32
    %c0_i32_0 = arith.constant 0 : i32
    %c0_i32_1 = arith.constant 0 : i32
    return %c0_i32, %c0_i32_0 : i32, i32
  }
  func.func @transform_7(%arg0: i32) -> (i32, i32) {
    %c0_i32 = arith.constant 0 : i32
    %c0_i32_0 = arith.constant 0 : i32
    return %c0_i32, %arg0 : i32, i32
  }
  func.func @transform_8(%arg0: i32) -> (i32, i32) {
    %c0_i32 = arith.constant 0 : i32
    %c0_i32_0 = arith.constant 0 : i32
    return %c0_i32, %arg0 : i32, i32
  }
}

</mosaic_0001>

<llo_original>
// kernel: tpu_custom_call.1
$region0: #{tpu_custom_call.1}
  #allocation0 [shape = 'u32[]', space=smem, size = 0x4, offset = 0x4, fixed_abs, tag = 'smem constant byte address 0x4 - core index']
  #allocation1 [shape = 'u32[144,128]{1,0:T(1,128)}', space=vmem, size = 0x12000, scoped, tag = 'internal scratch']
  #allocation2 [shape = 'f32[1,1]{1,0:T(1,128)S(6)}', space=smem, size = 0x200, scoped, tag = 'scoped memory for tpu_custom_call.1']
  %s0 = inlined_call_operand.vmem [shape: bf16[16,256], index: 0, kind: input, shape index: {}]
  %s1 = inlined_call_operand.vmem [shape: bf16[16,256], index: 1, kind: input, shape index: {}]
  %s2 = inlined_call_operand.vmem [shape: bf16[32,16], index: 2, kind: input, shape index: {}]
  %s3 = inlined_call_operand.vmem [shape: bf16[32,16], index: 3, kind: input, shape index: {}]
  %s4 = inlined_call_operand.vmem [shape: f32[32,1], index: 4, kind: input, shape index: {}]
  %s5 = inlined_call_operand.vmem [shape: f32[32,1], index: 5, kind: input, shape index: {}]
  %s6 = inlined_call_operand.<no memory space> [shape: f32[1,1], index: 6, kind: input, shape index: {}]
  %s7 = inlined_call_operand.vmem [shape: f32[1,256], index: 7, kind: input, shape index: {}]
  %s8 = inlined_call_operand.hbm [shape: f32[1,256], index: 8, kind: output, shape index: {}]
  %s9 = sld [smem:[#allocation0]]
  $region42: #{tpu_custom_call.1} parent=0
    _
  %s11 = ssub.s32 1, %s9
  %s12 = scalar_select 0, %s11, %s9
  %13 = sst [smem:[#allocation2]] %s6
  $region1: #{tpu_custom_call.1} parent=0
    #allocation3 [shape = 'u8[1024]{0}', space=vmem, size = 0x400, scoped, tag = 'output window, operand 0, single buffered']
    #allocation4 [shape = 's32[1]{0}', space=sflag, size = 0x4, scoped, tag = 'scoped memory for tpu_custom_call.1']
    %14 = vsyncpa [#allocation4], 0
    // Predicated region
    $region2: #{tpu_custom_call.1} parent=1 // pred_check
      _
    $region3: #{tpu_custom_call.1} parent=1 // pred_check_branch
      %16 = sbr.rel (0) target = $region5
    $region4: #{tpu_custom_call.1} parent=1 // pred_region
      _
    $region5: #{tpu_custom_call.1} parent=1 // pred_fallthru
      _
    // Predicated region
    $region6: #{tpu_custom_call.1} parent=1 // pred_check
      _
    $region7: #{tpu_custom_call.1} parent=1 // pred_check_branch
      %18 = sbr.rel (0) target = $region9
    $region8: #{tpu_custom_call.1} parent=1 // pred_region
      _
    $region9: #{tpu_custom_call.1} parent=1 // pred_fallthru
      _
    // Predicated region
    $region10: #{tpu_custom_call.1} parent=1 // pred_check
      _
    $region11: #{tpu_custom_call.1} parent=1 // pred_check_branch
      %20 = sbr.rel (0) target = $region13
    $region12: #{tpu_custom_call.1} parent=1 // pred_region
      _
    $region13: #{tpu_custom_call.1} parent=1 // pred_fallthru
      _
    // Predicated region
    $region14: #{tpu_custom_call.1} parent=1 // pred_check
      _
    $region15: #{tpu_custom_call.1} parent=1 // pred_check_branch
      %22 = sbr.rel (0) target = $region17
    $region16: #{tpu_custom_call.1} parent=1 // pred_region
      _
    $region17: #{tpu_custom_call.1} parent=1 // pred_fallthru
      _
    // Predicated region
    $region18: #{tpu_custom_call.1} parent=1 // pred_check
      _
    $region19: #{tpu_custom_call.1} parent=1 // pred_check_branch
      %24 = sbr.rel (0) target = $region21
    $region20: #{tpu_custom_call.1} parent=1 // pred_region
      _
    $region21: #{tpu_custom_call.1} parent=1 // pred_fallthru
      _
    // Predicated region
    $region22: #{tpu_custom_call.1} parent=1 // pred_check
      _
    $region23: #{tpu_custom_call.1} parent=1 // pred_check_branch
      %26 = sbr.rel (0) target = $region25
    $region24: #{tpu_custom_call.1} parent=1 // pred_region
      _
    $region25: #{tpu_custom_call.1} parent=1 // pred_fallthru
      _
    // Predicated region
    $region26: #{tpu_custom_call.1} parent=1 // pred_check
      _
    $region27: #{tpu_custom_call.1} parent=1 // pred_check_branch
      %28 = sbr.rel (0) target = $region29
    $region28: #{tpu_custom_call.1} parent=1 // pred_region
      _
    $region29: #{tpu_custom_call.1} parent=1 // pred_fallthru
      _
    // Predicated region
    $region30: #{tpu_custom_call.1} parent=1 // pred_check
      _
    $region31: #{tpu_custom_call.1} parent=1 // pred_check_branch
      %30 = sbr.rel (0) target = $region33
    $region32: #{tpu_custom_call.1} parent=1 // pred_region
      _
    $region33: #{tpu_custom_call.1} parent=1 // pred_fallthru
      _
    %v32 = vld [vmem:[%s2] sm:$0xf]
    %v33 = vld [vmem:[%s2 + $0x4] sm:$0xf]
    %v34 = vld [vmem:[%s2 + $0x8] sm:$0xf]
    %v35 = vld [vmem:[%s2 + $0xc] sm:$0xf]
    %v36 = vld [vmem:[%s0] sm:$0xff]
    %v37 = vld [vmem:[%s0 + $0x8] sm:$0xff]
    %v38 = vld [vmem:[%s3] sm:$0xf]
    %v39 = vld [vmem:[%s3 + $0x4] sm:$0xf]
    %v40 = vld [vmem:[%s3 + $0x8] sm:$0xf]
    %v41 = vld [vmem:[%s3 + $0xc] sm:$0xf]
    %v42 = vld [vmem:[%s1] sm:$0xff]
    %v43 = vld [vmem:[%s1 + $0x8] sm:$0xff]
    %v48 = vunpack.c.l.b16 %v38
    %v49 = vunpack.c.l.b16 %v39
    %v50 = vunpack.c.l.b16 %v40
    %v51 = vunpack.c.l.b16 %v41
    %v52 = vpack.c.b16 %v49, %v48
    %v53 = vpack.c.b16 %v51, %v50
    %v56 = vunpack.c.l.b16 %v42
    %v57 = vunpack.c.h.b16 %v42
    %v58 = vunpack.c.l.b16 %v43
    %v59 = vunpack.c.h.b16 %v43
    %v60 = vpack.c.b16 %v58, %v56
    %v61 = vpack.c.b16 %v59, %v57
    %vm64 = vcmask 130048
    %v66 = vsel %vm64, %v52, 0
    %v69 = vsel %vm64, %v53, 0
    %71 = vmatprep.subr.bf16.mxu0 %v61
    %72 = vmatpush1.bf16.msra.mxu0 %v60
    %73 = vmatprep.subr.bf16.mxu0 0
    %74 = vmatpush1.bf16.msra.mxu0 0
    %75 = vmatprep.subr.bf16.mxu0 0
    %76 = vmatpush1.bf16.msra.mxu0 0
    %77 = vmatprep.subr.bf16.mxu0 0
    %78 = vmatpush1.bf16.msra.mxu0 0
    %79 = vmatprep.subr.bf16.mxu0 0
    %80 = vmatpush1.bf16.msra.mxu0 0
    %81 = vmatprep.subr.bf16.mxu0 0
    %82 = vmatpush1.bf16.msra.mxu0 0
    %83 = vmatprep.subr.bf16.mxu0 0
    %84 = vmatpush1.bf16.msra.mxu0 0
    %85 = vmatprep.subr.bf16.mxu0 0
    %86 = vmatpush1.bf16.msra.mxu0 0
    %87 = vmatprep.subr.bf16.mxu0 0
    %88 = vmatpush1.bf16.msra.mxu0 0
    %89 = vmatprep.subr.bf16.mxu0 0
    %90 = vmatpush1.bf16.msra.mxu0 0
    %91 = vmatprep.subr.bf16.mxu0 0
    %92 = vmatpush1.bf16.msra.mxu0 0
    %93 = vmatprep.subr.bf16.mxu0 0
    %94 = vmatpush1.bf16.msra.mxu0 0
    %95 = vmatprep.subr.bf16.mxu0 0
    %96 = vmatpush1.bf16.msra.mxu0 0
    %97 = vmatprep.subr.bf16.mxu0 0
    %98 = vmatpush1.bf16.msra.mxu0 0
    %99 = vmatprep.subr.bf16.mxu0 0
    %100 = vmatpush1.bf16.msra.mxu0 0
    %101 = vmatprep.subr.bf16.mxu0 0
    %102 = vmatpush1.bf16.msra.mxu0 0
    %103 = vmatprep.mubr.bf16.mxu0 0
    %104 = vmatmul.mubr.bf16.gmra.mrb[0].mxu0 %v66
    %v105 = vpop.f32.mrb[0].mxu0
    %v106 = vadd.f32 0.0, %v105
    %v107 = vpop.f32.mrb[0].mxu0
    %v108 = vadd.f32 0.0, %v107
    %v109 = vpop.f32.mrb[0].mxu0
    %v110 = vadd.f32 0.0, %v109
    %v111 = vpop.f32.mrb[0].mxu0
    %v112 = vadd.f32 0.0, %v111
    %113 = vmatprep.mubr.bf16.mxu0 0
    %114 = vmatmul.mubr.bf16.gmra.mrb[0].mxu0 %v69
    %v115 = vpop.f32.mrb[0].mxu0
    %v116 = vadd.f32 0.0, %v115
    %v117 = vpop.f32.mrb[0].mxu0
    %v118 = vadd.f32 0.0, %v117
    %v119 = vpop.f32.mrb[0].mxu0
    %v120 = vadd.f32 0.0, %v119
    %v121 = vpop.f32.mrb[0].mxu0
    %v122 = vadd.f32 0.0, %v121
    %123 = vdwg.mxu0
    %v128 = vunpack.c.l.b16 %v32
    %v129 = vunpack.c.l.b16 %v33
    %v130 = vunpack.c.l.b16 %v34
    %v131 = vunpack.c.l.b16 %v35
    %v132 = vpack.c.b16 %v129, %v128
    %v133 = vpack.c.b16 %v131, %v130
    %v136 = vunpack.c.l.b16 %v36
    %v137 = vunpack.c.h.b16 %v36
    %v138 = vunpack.c.l.b16 %v37
    %v139 = vunpack.c.h.b16 %v37
    %v140 = vpack.c.b16 %v138, %v136
    %v141 = vpack.c.b16 %v139, %v137
    %v145 = vsel %vm64, %v132, 0
    %v148 = vsel %vm64, %v133, 0
    %150 = vmatprep.subr.bf16.mxu0 %v141
    %151 = vmatpush1.bf16.msra.mxu0 %v140
    %152 = vmatprep.subr.bf16.mxu0 0
    %153 = vmatpush1.bf16.msra.mxu0 0
    %154 = vmatprep.subr.bf16.mxu0 0
    %155 = vmatpush1.bf16.msra.mxu0 0
    %156 = vmatprep.subr.bf16.mxu0 0
    %157 = vmatpush1.bf16.msra.mxu0 0
    %158 = vmatprep.subr.bf16.mxu0 0
    %159 = vmatpush1.bf16.msra.mxu0 0
    %160 = vmatprep.subr.bf16.mxu0 0
    %161 = vmatpush1.bf16.msra.mxu0 0
    %162 = vmatprep.subr.bf16.mxu0 0
    %163 = vmatpush1.bf16.msra.mxu0 0
    %164 = vmatprep.subr.bf16.mxu0 0
    %165 = vmatpush1.bf16.msra.mxu0 0
    %166 = vmatprep.subr.bf16.mxu0 0
    %167 = vmatpush1.bf16.msra.mxu0 0
    %168 = vmatprep.subr.bf16.mxu0 0
    %169 = vmatpush1.bf16.msra.mxu0 0
    %170 = vmatprep.subr.bf16.mxu0 0
    %171 = vmatpush1.bf16.msra.mxu0 0
    %172 = vmatprep.subr.bf16.mxu0 0
    %173 = vmatpush1.bf16.msra.mxu0 0
    %174 = vmatprep.subr.bf16.mxu0 0
    %175 = vmatpush1.bf16.msra.mxu0 0
    %176 = vmatprep.subr.bf16.mxu0 0
    %177 = vmatpush1.bf16.msra.mxu0 0
    %178 = vmatprep.subr.bf16.mxu0 0
    %179 = vmatpush1.bf16.msra.mxu0 0
    %180 = vmatprep.subr.bf16.mxu0 0
    %181 = vmatpush1.bf16.msra.mxu0 0
    %182 = vmatprep.mubr.bf16.mxu0 0
    %183 = vmatmul.mubr.bf16.gmra.mrb[0].mxu0 %v145
    %v184 = vpop.f32.mrb[0].mxu0
    %v185 = vadd.f32 %v106, %v184
    %v186 = vpop.f32.mrb[0].mxu0
    %v187 = vadd.f32 %v108, %v186
    %v188 = vpop.f32.mrb[0].mxu0
    %v189 = vadd.f32 %v110, %v188
    %v190 = vpop.f32.mrb[0].mxu0
    %v191 = vadd.f32 %v112, %v190
    %192 = vmatprep.mubr.bf16.mxu0 0
    %193 = vmatmul.mubr.bf16.gmra.mrb[0].mxu0 %v148
    %v194 = vpop.f32.mrb[0].mxu0
    %v195 = vadd.f32 %v116, %v194
    %v196 = vpop.f32.mrb[0].mxu0
    %v197 = vadd.f32 %v118, %v196
    %v198 = vpop.f32.mrb[0].mxu0
    %v199 = vadd.f32 %v120, %v198
    %v200 = vpop.f32.mrb[0].mxu0
    %v201 = vadd.f32 %v122, %v200
    %202 = vdwg.mxu0
    %v203 = vld [vmem:[%s4] sm:$0xff]
    %v204 = vld [vmem:[%s4 + $0x8] sm:$0xff]
    %v205 = vld [vmem:[%s4 + $0x10] sm:$0xff]
    %v206 = vld [vmem:[%s4 + $0x18] sm:$0xff]
    %208 = vset.pattern.permute.xlu0 0
    %209 = vperm.xlu0 %208, %v203
    %v210 = vpop.permute.xlu0 %209
    %213 = vset.pattern.permute.xlu0 0
    %214 = vperm.xlu0 %213, %v204
    %v215 = vpop.permute.xlu0 %214
    %218 = vset.pattern.permute.xlu0 0
    %219 = vperm.xlu0 %218, %v205
    %v220 = vpop.permute.xlu0 %219
    %223 = vset.pattern.permute.xlu0 0
    %224 = vperm.xlu0 %223, %v206
    %v225 = vpop.permute.xlu0 %224
    %v227 = vadd.f32 %v185, %v210
    %v228 = vadd.f32 %v187, %v210
    %v229 = vadd.f32 %v189, %v215
    %v230 = vadd.f32 %v191, %v215
    %v231 = vadd.f32 %v195, %v220
    %v232 = vadd.f32 %v197, %v220
    %v233 = vadd.f32 %v199, %v225
    %v234 = vadd.f32 %v201, %v225
    %v235 = vmax.f32 %v227, 0.0
    %v236 = vmax.f32 %v228, 0.0
    %v237 = vmax.f32 %v229, 0.0
    %v238 = vmax.f32 %v230, 0.0
    %v239 = vmax.f32 %v231, 0.0
    %v240 = vmax.f32 %v232, 0.0
    %v241 = vmax.f32 %v233, 0.0
    %v242 = vmax.f32 %v234, 0.0
    %v243 = vld [vmem:[%s5] sm:$0xff]
    %v244 = vld [vmem:[%s5 + $0x8] sm:$0xff]
    %v245 = vld [vmem:[%s5 + $0x10] sm:$0xff]
    %v246 = vld [vmem:[%s5 + $0x18] sm:$0xff]
    %248 = vset.pattern.permute.xlu0 0
    %249 = vperm.xlu0 %248, %v243
    %v250 = vpop.permute.xlu0 %249
    %253 = vset.pattern.permute.xlu0 0
    %254 = vperm.xlu0 %253, %v244
    %v255 = vpop.permute.xlu0 %254
    %258 = vset.pattern.permute.xlu0 0
    %259 = vperm.xlu0 %258, %v245
    %v260 = vpop.permute.xlu0 %259
    %263 = vset.pattern.permute.xlu0 0
    %264 = vperm.xlu0 %263, %v246
    %v265 = vpop.permute.xlu0 %264
    %v267 = vmul.f32 %v250, %v235
    %v268 = vmul.f32 %v250, %v236
    %v269 = vmul.f32 %v255, %v237
    %v270 = vmul.f32 %v255, %v238
    %v271 = vmul.f32 %v260, %v239
    %v272 = vmul.f32 %v260, %v240
    %v273 = vmul.f32 %v265, %v241
    %v274 = vmul.f32 %v265, %v242
    %v275 = vadd.f32 %v267, %v269
    %v276 = vadd.f32 %v275, %v271
    %v277 = vadd.f32 %v276, %v273
    %v278 = vrot.slane %v277, 4
    %v279 = vadd.f32 %v277, %v278
    %v280 = vrot.slane %v279, 2
    %v281 = vadd.f32 %v279, %v280
    %v282 = vrot.slane %v281, 1
    %v283 = vadd.f32 %v281, %v282
    %v284 = vadd.f32 %v268, %v270
    %v285 = vadd.f32 %v284, %v272
    %v286 = vadd.f32 %v285, %v274
    %v287 = vrot.slane %v286, 4
    %v288 = vadd.f32 %v286, %v287
    %v289 = vrot.slane %v288, 2
    %v290 = vadd.f32 %v288, %v289
    %v291 = vrot.slane %v290, 1
    %v292 = vadd.f32 %v290, %v291
    %s293 = sld [smem:[#allocation2]]
    %v294 = vstv %s293
    %v295 = vadd.f32 %v283, %v294
    %v296 = vadd.f32 %v292, %v294
    %v297 = vld [vmem:[%s7] sm:$0x3]
    %v299 = vlaneseq
    %v300 = vshrl.u32 %v299, 7
    %v301 = vsub.s32 0, %v300
    %v302 = vrot.slane %v297, %v301
    %v303 = vlaneseq
    %v304 = vshrl.u32 %v303, 7
    %v305 = vsub.s32 1, %v304
    %v306 = vrot.slane %v297, %v305
    %v309 = vadd.f32 %v295, %v302
    %v310 = vadd.f32 %v296, %v306
    %v313 = vcombine.low %v309, %v310
    %v315 = vunpack.c.l.s4 1966171168
    %v316 = vunpack.c.0.s8 %v315
    %v317 = vlaneseq
    %v318 = vshrl.u32 %v317, 7
    %v319 = vsub.s32 %v316, %v318
    %v320 = vrot.slane %v313, %v319
    %v322 = vunpack.c.l.s4 1966171168
    %v323 = vunpack.c.0.s8 %v322
    %v324 = vlaneseq
    %v325 = vshrl.u32 %v324, 7
    %v326 = vsub.s32 %v323, %v325
    %v327 = vrot.slane %v320, %v326
    %v329 = vlaneseq
    %vm330 = vcmp.ge.s32.totalorder %v329, 0
    %vm331 = vcmp.lt.s32.totalorder %v329, 256
    %vm332 = vmand %vm330, %vm331
    %333 = vst.msk [vmem:[#allocation3] sm:$0x3] %vm332, %v327
    // Predicated region
    $region34: #{tpu_custom_call.1} parent=1 // pred_check
      _
    $region35: #{tpu_custom_call.1} parent=1 // pred_check_branch
      %335 = sbr.rel (0) target = $region37
    $region36: #{tpu_custom_call.1} parent=1 // pred_region
      %s337 = ssub.s32 32, 32
      %338 = vsyncadd [#allocation4], %s337
      %s340 = sshll.u32 [#allocation3], 4
      %s341 = int_to_ptr.vmem [resolvable:$true] %s340
      %343 = dma.vmem_to_hbm [thread:$0]  %s341, 32, %s8, [#allocation4]
    $region37: #{tpu_custom_call.1} parent=1 // pred_fallthru
      _
    // Predicated region
    $region38: #{tpu_custom_call.1} parent=1 // pred_check
      _
    $region39: #{tpu_custom_call.1} parent=1 // pred_check_branch
      %345 = sbr.rel (0) target = $region41
    $region40: #{tpu_custom_call.1} parent=1 // pred_region
      %346 = dma.done [#allocation4], 32
    $region41: #{tpu_custom_call.1} parent=1 // pred_fallthru
      _
    %347 = vsyncpa [#allocation4], 1

</llo_original>
